<compile_context>
chip_gen: v5e
topology: v5e:2x2
jax: 0.10.0
libtpu: 0.0.40
codegen_flags: <defaults>
</compile_context>

<pallas_src>
import functools

import jax
import jax.numpy as jnp
from jax import lax
from jax.experimental import pallas as pl
from jax.experimental.pallas import tpu as pltpu

_LANE = 128
_EPS = 1e-5


def _device_budgets():
    """(max_block_bytes, vmem_limit_bytes, num_tensorcores) for this TPU."""
    kind = ""
    try:
        kind = jax.devices()[0].device_kind.lower()
    except Exception:
        pass
    is_v7 = ("v7" in kind) or ("tpu7" in kind) or ("7x" in kind)
    num_cores = 2 if is_v7 else 1

    vmem_cap = None
    try:
        vmem_cap = int(pltpu.get_tpu_info().vmem_capacity_bytes)
    except Exception:
        vmem_cap = None
    if vmem_cap is None:
        if is_v7:
            vmem_cap = 64 * 1024 * 1024
        elif ("v5" in kind) or ("v6" in kind):
            vmem_cap = 128 * 1024 * 1024
        else:
            vmem_cap = 64 * 1024 * 1024  # conservative default for unknown parts

    vmem_limit = (vmem_cap // 4) * 3      # leave 25% headroom under physical VMEM
    # in + out blocks (double-buffered) + f32 temporaries -> ~8x one block.
    max_block = vmem_limit // 8           # ~12 MiB on v5e/v6e, ~6 MiB on v7x
    return max_block, vmem_limit, num_cores


def _channel_stats(s1, s2, gamma, ga, beta, inv_hw, inv_cm1):
    """s1/s2: (Bt, C, 1, 1) spatial sum / sum-of-squares.  Returns (scale, shift)."""
    mean = s1 * inv_hw
    # Biased spatial variance via E[x^2] - mean^2 (single pass over x; mild
    # cancellation risk only if |mean| >> std, which normalized activations avoid).
    var = jnp.maximum(s2 * inv_hw - mean * mean, 0.0)

    # Cross-channel statistics of the per-channel means (torch.var -> unbiased).
    m = jnp.mean(mean, axis=1, keepdims=True)                 # (Bt, 1, 1, 1)
    d = mean - m
    v = jnp.sum(d * d, axis=1, keepdims=True) * inv_cm1       # unbiased var of means
    means_n = d * lax.rsqrt(v + _EPS)                         # (Bt, C, 1, 1)

    inv_std = lax.rsqrt(var + _EPS)
    scale = gamma * inv_std                                   # gamma / sqrt(var+eps)
    shift = beta + ga * means_n - mean * scale                # ga = gamma * alpha
    return scale, shift


def _one_pass_kernel(x_ref, gamma_ref, ga_ref, beta_ref, o_ref, *, inv_hw, inv_cm1):
    # x_ref: (Bt, C, Hs, 128) -- whole (lane-padded) feature maps for Bt batch elems.
    x = x_ref[...].astype(jnp.float32)
    # Lane-resident reduction: sublane axis first (VPU vreg adds), one XLU
    # cross-lane reduce per (b, c) at the end.
    p1 = jnp.sum(x, axis=2, keepdims=True)           # (Bt, C, 1, 128)
    p2 = jnp.sum(x * x, axis=2, keepdims=True)
    s1 = jnp.sum(p1, axis=3, keepdims=True)          # (Bt, C, 1, 1)
    s2 = jnp.sum(p2, axis=3, keepdims=True)
    scale, shift = _channel_stats(
        s1, s2, gamma_ref[...], ga_ref[...], beta_ref[...], inv_hw, inv_cm1)
    # Re-read x_ref instead of reusing the cached f32 copy (keeps live VMEM low
    # for sub-f32 inputs; VMEM re-reads are cheap).
    o_ref[...] = (x_ref[...].astype(jnp.float32) * scale + shift).astype(o_ref.dtype)


def _stats_kernel(x_ref, gamma_ref, ga_ref, beta_ref, scale_ref, shift_ref,
                  p1_ref, p2_ref, *, inv_hw, inv_cm1, hs, ht, ragged):
    t = pl.program_id(1)

    @pl.when(t == 0)
    def _():
        p1_ref[...] = jnp.zeros_like(p1_ref)
        p2_ref[...] = jnp.zeros_like(p2_ref)

    x = x_ref[...].astype(jnp.float32)  # (1, C, ht, 128)
    if ragged:
        # Last spatial tile overhangs the (lane-padded) map: mask the garbage
        # rows so the running sums stay exact.  Static flag -> no cost when
        # ht divides hs.
        rid = lax.broadcasted_iota(jnp.int32, x.shape, 2) + t * ht
        x = jnp.where(rid < hs, x, 0.0)

    # Lane-resident accumulators: VPU adds per tile, single cross-lane reduce
    # only in the epilogue.
    p1_ref[...] += jnp.sum(x, axis=2, keepdims=True)        # (1, C, 1, 128)
    p2_ref[...] += jnp.sum(x * x, axis=2, keepdims=True)

    @pl.when(t == pl.num_programs(1) - 1)
    def _():
        s1 = jnp.sum(p1_ref[...], axis=3, keepdims=True)    # (1, C, 1, 1)
        s2 = jnp.sum(p2_ref[...], axis=3, keepdims=True)
        scale, shift = _channel_stats(
            s1, s2, gamma_ref[...], ga_ref[...], beta_ref[...], inv_hw, inv_cm1)
        scale_ref[...] = scale
        shift_ref[...] = shift


def _apply_kernel(x_ref, scale_ref, shift_ref, o_ref):
    o_ref[...] = (x_ref[...].astype(jnp.float32) * scale_ref[...]
                  + shift_ref[...]).astype(o_ref.dtype)


def instance_norm_2d_plus(x, alpha, gamma, beta, *, max_block_bytes=None,
                          vmem_limit_bytes=None):
    """x: (B, C, H, W); alpha/gamma/beta: (C,).  Matches InstanceNorm2dPlus.forward."""
    B, C, H, W = x.shape
    HW = H * W
    out_dtype = x.dtype

    auto_block, auto_limit, num_cores = _device_budgets()
    if max_block_bytes is None:
        max_block_bytes = auto_block
    if vmem_limit_bytes is None:
        vmem_limit_bytes = auto_limit

    gamma_f = gamma.astype(jnp.float32)
    gamma4 = gamma_f.reshape(1, C, 1, 1)
    ga4 = (gamma_f * alpha.astype(jnp.float32)).reshape(1, C, 1, 1)
    beta4 = beta.astype(jnp.float32).reshape(1, C, 1, 1)

    inv_hw = 1.0 / HW
    # torch.var is unbiased; C == 1 gives NaN in PyTorch and this mirrors that.
    inv_cm1 = 1.0 / (C - 1) if C > 1 else float("nan")

    hs = -(-HW // _LANE)          # 128-lane rows per feature map
    hw_pad = hs * _LANE

    x_flat = x.reshape(B, C, HW)
    if hw_pad != HW:
        # One-time copy only when HW is not a multiple of 128: the lane-dense
        # view needs a 128-divisible spatial extent.  Padded lanes are zeros,
        # and the true 1/HW divisor keeps the stats exact.
        x_flat = jnp.pad(x_flat, ((0, 0), (0, 0), (0, hw_pad - HW)))
    x4 = x_flat.reshape(B, C, hs, _LANE)

    # Each (1, C, 1, 1) param / scale / shift array puts every channel scalar
    # into its own (8,128) VMEM tile (~4 KiB/channel/array, double-buffered);
    # reserve that out of the block budget so large C cannot blow VMEM.
    param_vmem = 5 * C * 4096 * 2
    budget = max(max_block_bytes - param_vmem, max_block_bytes // 4)

    bytes_full_map = C * hs * _LANE * 4  # one f32 feature map (lane-padded)

    if bytes_full_map <= budget:
        # ---- one-pass path: whole feature maps per grid step, multi-batch blocks ----
        bt = max(1, min(B, budget // bytes_full_map))
        if num_cores > 1 and B >= num_cores:
            bt = min(bt, -(-B // num_cores))     # keep >= num_cores grid steps (v7x)
        grid_b = -(-B // bt)
        bt = -(-B // grid_b)                     # balanced blocks; ragged last block OK
        grid_b = -(-B // bt)

        kernel = functools.partial(_one_pass_kernel, inv_hw=inv_hw, inv_cm1=inv_cm1)
        out4 = pl.pallas_call(
            kernel,
            out_shape=jax.ShapeDtypeStruct((B, C, hs, _LANE), out_dtype),
            grid_spec=pltpu.PrefetchScalarGridSpec(
                num_scalar_prefetch=0,
                grid=(grid_b,),
                in_specs=[
                    pl.BlockSpec((bt, C, hs, _LANE), lambda b: (b, 0, 0, 0)),
                    pl.BlockSpec((1, C, 1, 1), lambda b: (0, 0, 0, 0)),
                    pl.BlockSpec((1, C, 1, 1), lambda b: (0, 0, 0, 0)),
                    pl.BlockSpec((1, C, 1, 1), lambda b: (0, 0, 0, 0)),
                ],
                out_specs=pl.BlockSpec((bt, C, hs, _LANE), lambda b: (b, 0, 0, 0)),
            ),
            compiler_params=pltpu.CompilerParams(
                dimension_semantics=("parallel",),
                vmem_limit_bytes=vmem_limit_bytes,
            ),
        )(x4, gamma4, ga4, beta4)
    else:
        # ---- two-pass path: tile the spatial axis; no extra host padding ----
        bytes_per_row = C * _LANE * 4
        tile_target = max(budget // 2, 8 * bytes_per_row)
        ht = max(8, ((tile_target // bytes_per_row) // 8) * 8)
        ht = min(ht, ((hs + 7) // 8) * 8)
        n_t = -(-hs // ht)
        ragged = (hs % ht) != 0
        # NOTE: for B == 1 the stats pass runs on a single TensorCore on v7x
        # (the reduction axis is not core-split); the apply pass is still fully
        # parallel over (B, n_t).

        stats_kernel = functools.partial(
            _stats_kernel, inv_hw=inv_hw, inv_cm1=inv_cm1, hs=hs, ht=ht, ragged=ragged)
        scale, shift = pl.pallas_call(
            stats_kernel,
            out_shape=(jax.ShapeDtypeStruct((B, C, 1, 1), jnp.float32),
                       jax.ShapeDtypeStruct((B, C, 1, 1), jnp.float32)),
            grid_spec=pltpu.PrefetchScalarGridSpec(
                num_scalar_prefetch=0,
                grid=(B, n_t),
                in_specs=[
                    pl.BlockSpec((1, C, ht, _LANE), lambda b, t: (b, 0, t, 0)),
                    pl.BlockSpec((1, C, 1, 1), lambda b, t: (0, 0, 0, 0)),
                    pl.BlockSpec((1, C, 1, 1), lambda b, t: (0, 0, 0, 0)),
                    pl.BlockSpec((1, C, 1, 1), lambda b, t: (0, 0, 0, 0)),
                ],
                out_specs=(pl.BlockSpec((1, C, 1, 1), lambda b, t: (b, 0, 0, 0)),
                           pl.BlockSpec((1, C, 1, 1), lambda b, t: (b, 0, 0, 0))),
                scratch_shapes=[pltpu.VMEM((1, C, 1, _LANE), jnp.float32),
                                pltpu.VMEM((1, C, 1, _LANE), jnp.float32)],
            ),
            compiler_params=pltpu.CompilerParams(
                dimension_semantics=("parallel", "arbitrary"),
                vmem_limit_bytes=vmem_limit_bytes,
            ),
        )(x4, gamma4, ga4, beta4)

        out4 = pl.pallas_call(
            _apply_kernel,
            out_shape=jax.ShapeDtypeStruct((B, C, hs, _LANE), out_dtype),
            grid_spec=pltpu.PrefetchScalarGridSpec(
                num_scalar_prefetch=0,
                grid=(B, n_t),
                in_specs=[
                    pl.BlockSpec((1, C, ht, _LANE), lambda b, t: (b, 0, t, 0)),
                    pl.BlockSpec((1, C, 1, 1), lambda b, t: (b, 0, 0, 0)),
                    pl.BlockSpec((1, C, 1, 1), lambda b, t: (b, 0, 0, 0)),
                ],
                out_specs=pl.BlockSpec((1, C, ht, _LANE), lambda b, t: (b, 0, t, 0)),
            ),
            compiler_params=pltpu.CompilerParams(
                dimension_semantics=("parallel", "parallel"),
                vmem_limit_bytes=vmem_limit_bytes,
            ),
        )(x4, scale, shift)

    if hw_pad == HW:
        return out4.reshape(B, C, H, W)          # free relayout, no copy
    return out4.reshape(B, C, hw_pad)[:, :, :HW].reshape(B, C, H, W)


def _reference(x, alpha, gamma, beta):
    """Pure-JAX reference mirroring the PyTorch forward."""
    means = jnp.mean(x, axis=(2, 3))                      # (B, C)
    m = jnp.mean(means, axis=-1, keepdims=True)           # (B, 1)
    v = jnp.var(means, axis=-1, keepdims=True, ddof=1)    # torch.var (unbiased)
    means_n = (means - m) / jnp.sqrt(v + 1e-5)            # (B, C)
    mu = jnp.mean(x, axis=(2, 3), keepdims=True)
    var = jnp.var(x, axis=(2, 3), keepdims=True)          # biased
    h = (x - mu) / jnp.sqrt(var + 1e-5)
    h = h + means_n[..., None, None] * alpha[None, :, None, None]
    return gamma[None, :, None, None] * h + beta[None, :, None, None]


if __name__ == "__main__":
    key = jax.random.PRNGKey(0)
    kx, ka, kg, kx2, kx3 = jax.random.split(key, 5)

    C = 4
    # deterministic params matching __init__: alpha,gamma ~ N(1, 0.02), beta = 0
    alpha = 1.0 + 0.02 * jax.random.normal(ka, (C,), dtype=jnp.float32)
    gamma = 1.0 + 0.02 * jax.random.normal(kg, (C,), dtype=jnp.float32)
    beta = jnp.zeros((C,), dtype=jnp.float32)

    # 1) one-pass path with auto (generation-aware) budgets, HW % 128 == 0.
    x = jax.random.normal(kx, (2, C, 16, 16), dtype=jnp.float32)
    out = jax.block_until_ready(instance_norm_2d_plus(x, alpha, gamma, beta))
    ref = _reference(x, alpha, gamma, beta)
    assert out.shape == x.shape
    assert jnp.max(jnp.abs(out - ref)) < 1e-4

    # 2) two-pass path with a ragged spatial tile (forced tiny block budget):
    #    hs = 20 lane-rows, ht = 8 -> 3 tiles, last one masked in-kernel.
    x2 = jax.random.normal(kx2, (2, C, 32, 80), dtype=jnp.float32)
    out2 = jax.block_until_ready(
        instance_norm_2d_plus(x2, alpha, gamma, beta, max_block_bytes=16 * 1024))
    ref2 = _reference(x2, alpha, gamma, beta)
    assert jnp.max(jnp.abs(out2 - ref2)) < 1e-4

    # 3) one-pass with a ragged batch block (B=3, blocks of 2) and HW not a
    #    multiple of 128 (exercises the single pad-to-128 + final slice).
    x3 = jax.random.normal(kx3, (3, C, 12, 12), dtype=jnp.float32)
    out3 = jax.block_until_ready(
        instance_norm_2d_plus(x3, alpha, gamma, beta, max_block_bytes=32 * 1024))
    ref3 = _reference(x3, alpha, gamma, beta)
    assert jnp.max(jnp.abs(out3 - ref3)) < 1e-4

    print("KERNEL_OK")
</pallas_src>

<mosaic_0001>
module attributes {stable_mosaic.version = 11 : i64} {
  func.func @_one_pass_kernel(%arg0: i32, %arg1: memref<2x4x2x128xf32, #tpu.memory_space<vmem>>, %arg2: memref<1x4x1x1xf32, #tpu.memory_space<vmem>>, %arg3: memref<1x4x1x1xf32, #tpu.memory_space<vmem>>, %arg4: memref<1x4x1x1xf32, #tpu.memory_space<vmem>>, %arg5: memref<2x4x2x128xf32, #tpu.memory_space<vmem>>) attributes {dimension_semantics = [#tpu.dimension_semantics<parallel>], iteration_bounds = array<i64: 1>, scalar_prefetch = 0 : i64, scratch_operands = 0 : i64, tpu.core_type = #tpu.core_type<tc>, window_params = [{transform_indices = @transform_0, window_bounds = array<i64: 2, 4, 2, 128>}, {pipeline_mode = #tpu.pipeline_mode<synchronous>, transform_indices = @transform_1, window_bounds = array<i64: 1, 4, 1, 1>}, {pipeline_mode = #tpu.pipeline_mode<synchronous>, transform_indices = @transform_2, window_bounds = array<i64: 1, 4, 1, 1>}, {pipeline_mode = #tpu.pipeline_mode<synchronous>, transform_indices = @transform_3, window_bounds = array<i64: 1, 4, 1, 1>}, {transform_indices = @transform_4, window_bounds = array<i64: 2, 4, 2, 128>}]} {
    %c0 = arith.constant 0 : index
    %c0_0 = arith.constant 0 : index
    %c0_1 = arith.constant 0 : index
    %c0_2 = arith.constant 0 : index
    %0 = vector.load %arg1[%c0, %c0_0, %c0_1, %c0_2] : memref<2x4x2x128xf32, #tpu.memory_space<vmem>>, vector<2x4x2x128xf32>
    %cst = arith.constant dense<0.000000e+00> : vector<2x4x128xf32>
    %1 = vector.multi_reduction <add>, %0, %cst [2] : vector<2x4x2x128xf32> to vector<2x4x128xf32>
    %2 = vector.shape_cast %1 : vector<2x4x128xf32> to vector<2x4x1x128xf32>
    %3 = arith.mulf %0, %0 : vector<2x4x2x128xf32>
    %cst_3 = arith.constant dense<0.000000e+00> : vector<2x4x128xf32>
    %4 = vector.multi_reduction <add>, %3, %cst_3 [2] : vector<2x4x2x128xf32> to vector<2x4x128xf32>
    %5 = vector.shape_cast %4 : vector<2x4x128xf32> to vector<2x4x1x128xf32>
    %cst_4 = arith.constant dense<0.000000e+00> : vector<2x4x1xf32>
    %6 = vector.multi_reduction <add>, %2, %cst_4 [3] : vector<2x4x1x128xf32> to vector<2x4x1xf32>
    %7 = vector.shape_cast %6 : vector<2x4x1xf32> to vector<2x4x1x1xf32>
    %cst_5 = arith.constant dense<0.000000e+00> : vector<2x4x1xf32>
    %8 = vector.multi_reduction <add>, %5, %cst_5 [3] : vector<2x4x1x128xf32> to vector<2x4x1xf32>
    %9 = vector.shape_cast %8 : vector<2x4x1xf32> to vector<2x4x1x1xf32>
    %c0_6 = arith.constant 0 : index
    %c0_7 = arith.constant 0 : index
    %c0_8 = arith.constant 0 : index
    %c0_9 = arith.constant 0 : index
    %10 = vector.load %arg2[%c0_6, %c0_7, %c0_8, %c0_9] : memref<1x4x1x1xf32, #tpu.memory_space<vmem>>, vector<1x4x1x1xf32>
    %c0_10 = arith.constant 0 : index
    %c0_11 = arith.constant 0 : index
    %c0_12 = arith.constant 0 : index
    %c0_13 = arith.constant 0 : index
    %11 = vector.load %arg3[%c0_10, %c0_11, %c0_12, %c0_13] : memref<1x4x1x1xf32, #tpu.memory_space<vmem>>, vector<1x4x1x1xf32>
    %c0_14 = arith.constant 0 : index
    %c0_15 = arith.constant 0 : index
    %c0_16 = arith.constant 0 : index
    %c0_17 = arith.constant 0 : index
    %12 = vector.load %arg4[%c0_14, %c0_15, %c0_16, %c0_17] : memref<1x4x1x1xf32, #tpu.memory_space<vmem>>, vector<1x4x1x1xf32>
    %cst_18 = arith.constant 3.906250e-03 : f32
    %13 = vector.broadcast %cst_18 : f32 to vector<2x4x1x1xf32>
    %14 = arith.mulf %7, %13 : vector<2x4x1x1xf32>
    %cst_19 = arith.constant 3.906250e-03 : f32
    %15 = vector.broadcast %cst_19 : f32 to vector<2x4x1x1xf32>
    %16 = arith.mulf %9, %15 : vector<2x4x1x1xf32>
    %17 = arith.mulf %14, %14 : vector<2x4x1x1xf32>
    %18 = arith.subf %16, %17 : vector<2x4x1x1xf32>
    %cst_20 = arith.constant 0.000000e+00 : f32
    %19 = vector.broadcast %cst_20 : f32 to vector<2x4x1x1xf32>
    %20 = arith.maximumf %18, %19 : vector<2x4x1x1xf32>
    %cst_21 = arith.constant dense<0.000000e+00> : vector<2x1x1xf32>
    %21 = vector.multi_reduction <add>, %14, %cst_21 [1] : vector<2x4x1x1xf32> to vector<2x1x1xf32>
    %22 = vector.shape_cast %21 : vector<2x1x1xf32> to vector<2x1x1x1xf32>
    %cst_22 = arith.constant 4.000000e+00 : f32
    %23 = vector.broadcast %cst_22 : f32 to vector<2x1x1x1xf32>
    %24 = arith.divf %22, %23 : vector<2x1x1x1xf32>
    %25 = vector.broadcast %24 : vector<2x1x1x1xf32> to vector<2x4x1x1xf32>
    %26 = arith.subf %14, %25 : vector<2x4x1x1xf32>
    %27 = arith.mulf %26, %26 : vector<2x4x1x1xf32>
    %cst_23 = arith.constant dense<0.000000e+00> : vector<2x1x1xf32>
    %28 = vector.multi_reduction <add>, %27, %cst_23 [1] : vector<2x4x1x1xf32> to vector<2x1x1xf32>
    %29 = vector.shape_cast %28 : vector<2x1x1xf32> to vector<2x1x1x1xf32>
    %cst_24 = arith.constant 0.333333343 : f32
    %30 = vector.broadcast %cst_24 : f32 to vector<2x1x1x1xf32>
    %31 = arith.mulf %29, %30 : vector<2x1x1x1xf32>
    %cst_25 = arith.constant 9.99999974E-6 : f32
    %32 = vector.broadcast %cst_25 : f32 to vector<2x1x1x1xf32>
    %33 = arith.addf %31, %32 : vector<2x1x1x1xf32>
    %34 = math.rsqrt %33 : vector<2x1x1x1xf32>
    %35 = vector.broadcast %34 : vector<2x1x1x1xf32> to vector<2x4x1x1xf32>
    %36 = arith.mulf %26, %35 : vector<2x4x1x1xf32>
    %cst_26 = arith.constant 9.99999974E-6 : f32
    %37 = vector.broadcast %cst_26 : f32 to vector<2x4x1x1xf32>
    %38 = arith.addf %20, %37 : vector<2x4x1x1xf32>
    %39 = math.rsqrt %38 : vector<2x4x1x1xf32>
    %40 = vector.broadcast %10 : vector<1x4x1x1xf32> to vector<2x4x1x1xf32>
    %41 = arith.mulf %40, %39 : vector<2x4x1x1xf32>
    %42 = vector.broadcast %11 : vector<1x4x1x1xf32> to vector<2x4x1x1xf32>
    %43 = arith.mulf %42, %36 : vector<2x4x1x1xf32>
    %44 = vector.broadcast %12 : vector<1x4x1x1xf32> to vector<2x4x1x1xf32>
    %45 = arith.addf %44, %43 : vector<2x4x1x1xf32>
    %46 = arith.mulf %14, %41 : vector<2x4x1x1xf32>
    %47 = arith.subf %45, %46 : vector<2x4x1x1xf32>
    %c0_27 = arith.constant 0 : index
    %c0_28 = arith.constant 0 : index
    %c0_29 = arith.constant 0 : index
    %c0_30 = arith.constant 0 : index
    %48 = vector.load %arg1[%c0_27, %c0_28, %c0_29, %c0_30] : memref<2x4x2x128xf32, #tpu.memory_space<vmem>>, vector<2x4x2x128xf32>
    %49 = vector.broadcast %41 : vector<2x4x1x1xf32> to vector<2x4x2x128xf32>
    %50 = arith.mulf %48, %49 : vector<2x4x2x128xf32>
    %51 = vector.broadcast %47 : vector<2x4x1x1xf32> to vector<2x4x2x128xf32>
    %52 = arith.addf %50, %51 : vector<2x4x2x128xf32>
    %c0_31 = arith.constant 0 : index
    %c0_32 = arith.constant 0 : index
    %c0_33 = arith.constant 0 : index
    %c0_34 = arith.constant 0 : index
    %53 = vector.load %arg5[%c0_31, %c0_32, %c0_33, %c0_34] : memref<2x4x2x128xf32, #tpu.memory_space<vmem>>, vector<2x4x2x128xf32>
    tpu.vector_store %arg5[%c0_31, %c0_32, %c0_33, %c0_34], %52 {strides = array<i32>} : memref<2x4x2x128xf32, #tpu.memory_space<vmem>>, vector<2x4x2x128xf32>,
    return
  }
  func.func @transform_0(%arg0: i32) -> (i32, i32, i32, i32) {
    %c0_i32 = arith.constant 0 : i32
    %c0_i32_0 = arith.constant 0 : i32
    %c0_i32_1 = arith.constant 0 : i32
    %c0_i32_2 = arith.constant 0 : i32
    return %arg0, %c0_i32, %c0_i32_0, %c0_i32_1 : i32, i32, i32, i32
  }
  func.func @transform_1(%arg0: i32) -> (i32, i32, i32, i32) {
    %c0_i32 = arith.constant 0 : i32
    %c0_i32_0 = arith.constant 0 : i32
    %c0_i32_1 = arith.constant 0 : i32
    %c0_i32_2 = arith.constant 0 : i32
    %c0_i32_3 = arith.constant 0 : i32
    return %c0_i32, %c0_i32_0, %c0_i32_1, %c0_i32_2 : i32, i32, i32, i32
  }
  func.func @transform_2(%arg0: i32) -> (i32, i32, i32, i32) {
    %c0_i32 = arith.constant 0 : i32
    %c0_i32_0 = arith.constant 0 : i32
    %c0_i32_1 = arith.constant 0 : i32
    %c0_i32_2 = arith.constant 0 : i32
    %c0_i32_3 = arith.constant 0 : i32
    return %c0_i32, %c0_i32_0, %c0_i32_1, %c0_i32_2 : i32, i32, i32, i32
  }
  func.func @transform_3(%arg0: i32) -> (i32, i32, i32, i32) {
    %c0_i32 = arith.constant 0 : i32
    %c0_i32_0 = arith.constant 0 : i32
    %c0_i32_1 = arith.constant 0 : i32
    %c0_i32_2 = arith.constant 0 : i32
    %c0_i32_3 = arith.constant 0 : i32
    return %c0_i32, %c0_i32_0, %c0_i32_1, %c0_i32_2 : i32, i32, i32, i32
  }
  func.func @transform_4(%arg0: i32) -> (i32, i32, i32, i32) {
    %c0_i32 = arith.constant 0 : i32
    %c0_i32_0 = arith.constant 0 : i32
    %c0_i32_1 = arith.constant 0 : i32
    %c0_i32_2 = arith.constant 0 : i32
    return %arg0, %c0_i32, %c0_i32_0, %c0_i32_1 : i32, i32, i32, i32
  }
}

</mosaic_0001>

<llo_original>
// kernel: tpu_custom_call.1
$region0: #{tpu_custom_call.1}
  #allocation0 [shape = 'u32[]', space=smem, size = 0x4, offset = 0x4, fixed_abs, tag = 'smem constant byte address 0x4 - core index']
  #allocation1 [shape = 'u32[72,128]{1,0:T(1,128)}', space=vmem, size = 0x9000, scoped, tag = 'internal scratch']
  %s0 = inlined_call_operand.hbm [shape: f32[2,4,2,128], index: 0, kind: input, shape index: {}]
  %s1 = inlined_call_operand.vmem [shape: f32[1,4,1,1], index: 1, kind: input, shape index: {}]
  %s2 = inlined_call_operand.vmem [shape: f32[1,4,1,1], index: 2, kind: input, shape index: {}]
  %s3 = inlined_call_operand.vmem [shape: f32[1,4,1,1], index: 3, kind: input, shape index: {}]
  %s4 = inlined_call_operand.hbm [shape: f32[2,4,2,128], index: 4, kind: output, shape index: {}]
  %s5 = sld [smem:[#allocation0]]
  $region30: #{tpu_custom_call.1} parent=0
    _
  %s7 = ssub.s32 1, %s5
  %s8 = scalar_select 0, %s7, %s5
  $region1: #{tpu_custom_call.1} parent=0
    #allocation2 [shape = 'u8[8192]{0}', space=vmem, size = 0x2000, scoped, tag = 'input window, operand 0, single buffered']
    #allocation3 [shape = 's32[1]{0}', space=sflag, size = 0x4, scoped, tag = 'scoped memory for tpu_custom_call.1']
    #allocation4 [shape = 's32[1]{0}', space=sflag, size = 0x4, scoped, tag = 'scoped memory for tpu_custom_call.1']
    #allocation5 [shape = 'u8[8192]{0}', space=vmem, size = 0x2000, scoped, tag = 'output window, operand 0, single buffered']
    %9 = vsyncpa [#allocation3], 0
    %10 = vsyncpa [#allocation4], 0
    // Predicated region
    $region2: #{tpu_custom_call.1} parent=1 // pred_check
      _
    $region3: #{tpu_custom_call.1} parent=1 // pred_check_branch
      %12 = sbr.rel (0) target = $region5
    $region4: #{tpu_custom_call.1} parent=1 // pred_region
      %14 = vsyncadd [#allocation3], 0
      %s15 = sshll.u32 %s0, 4
      %s16 = int_to_ptr.hbm [resolvable:$true] %s15
      %s17 = sshll.u32 [#allocation2], 4
      %s18 = int_to_ptr.vmem [resolvable:$true] %s17
      %23 = dma.hbm_to_vmem [thread:$0]  %s16, 256, %s18, [#allocation3], 32, 32, 2
    $region5: #{tpu_custom_call.1} parent=1 // pred_fallthru
      _
    // Predicated region
    $region6: #{tpu_custom_call.1} parent=1 // pred_check
      _
    $region7: #{tpu_custom_call.1} parent=1 // pred_check_branch
      %25 = sbr.rel (0) target = $region9
    $region8: #{tpu_custom_call.1} parent=1 // pred_region
      _
    $region9: #{tpu_custom_call.1} parent=1 // pred_fallthru
      _
    // Predicated region
    $region10: #{tpu_custom_call.1} parent=1 // pred_check
      _
    $region11: #{tpu_custom_call.1} parent=1 // pred_check_branch
      %27 = sbr.rel (0) target = $region13
    $region12: #{tpu_custom_call.1} parent=1 // pred_region
      _
    $region13: #{tpu_custom_call.1} parent=1 // pred_fallthru
      _
    // Predicated region
    $region14: #{tpu_custom_call.1} parent=1 // pred_check
      _
    $region15: #{tpu_custom_call.1} parent=1 // pred_check_branch
      %29 = sbr.rel (0) target = $region17
    $region16: #{tpu_custom_call.1} parent=1 // pred_region
      _
    $region17: #{tpu_custom_call.1} parent=1 // pred_fallthru
      _
    // Predicated region
    $region18: #{tpu_custom_call.1} parent=1 // pred_check
      _
    $region19: #{tpu_custom_call.1} parent=1 // pred_check_branch
      %31 = sbr.rel (0) target = $region21
    $region20: #{tpu_custom_call.1} parent=1 // pred_region
      %33 = dma.done [#allocation3], 256
    $region21: #{tpu_custom_call.1} parent=1 // pred_fallthru
      _
    %v34 = vld [vmem:[#allocation2] sm:$0x3]
    %v35 = vld [vmem:[#allocation2 + $0x2] sm:$0x3]
    %v36 = vld [vmem:[#allocation2 + $0x4] sm:$0x3]
    %v37 = vld [vmem:[#allocation2 + $0x6] sm:$0x3]
    %v38 = vld [vmem:[#allocation2 + $0x8] sm:$0x3]
    %v39 = vld [vmem:[#allocation2 + $0xa] sm:$0x3]
    %v40 = vld [vmem:[#allocation2 + $0xc] sm:$0x3]
    %v41 = vld [vmem:[#allocation2 + $0xe] sm:$0x3]
    %vm42 = vcmask 1041408
    %v43 = vsel %vm42, %v34, 0.0
    %v44 = vrot.slane %v43, 4
    %v45 = vadd.f32 %v43, %v44
    %v46 = vrot.slane %v45, 2
    %v47 = vadd.f32 %v45, %v46
    %v48 = vrot.slane %v47, 1
    %v49 = vadd.f32 %v47, %v48
    %v50 = vsel %vm42, %v35, 0.0
    %v51 = vrot.slane %v50, 4
    %v52 = vadd.f32 %v50, %v51
    %v53 = vrot.slane %v52, 2
    %v54 = vadd.f32 %v52, %v53
    %v55 = vrot.slane %v54, 1
    %v56 = vadd.f32 %v54, %v55
    %v57 = vsel %vm42, %v36, 0.0
    %v58 = vrot.slane %v57, 4
    %v59 = vadd.f32 %v57, %v58
    %v60 = vrot.slane %v59, 2
    %v61 = vadd.f32 %v59, %v60
    %v62 = vrot.slane %v61, 1
    %v63 = vadd.f32 %v61, %v62
    %v64 = vsel %vm42, %v37, 0.0
    %v65 = vrot.slane %v64, 4
    %v66 = vadd.f32 %v64, %v65
    %v67 = vrot.slane %v66, 2
    %v68 = vadd.f32 %v66, %v67
    %v69 = vrot.slane %v68, 1
    %v70 = vadd.f32 %v68, %v69
    %v71 = vsel %vm42, %v38, 0.0
    %v72 = vrot.slane %v71, 4
    %v73 = vadd.f32 %v71, %v72
    %v74 = vrot.slane %v73, 2
    %v75 = vadd.f32 %v73, %v74
    %v76 = vrot.slane %v75, 1
    %v77 = vadd.f32 %v75, %v76
    %v78 = vsel %vm42, %v39, 0.0
    %v79 = vrot.slane %v78, 4
    %v80 = vadd.f32 %v78, %v79
    %v81 = vrot.slane %v80, 2
    %v82 = vadd.f32 %v80, %v81
    %v83 = vrot.slane %v82, 1
    %v84 = vadd.f32 %v82, %v83
    %v85 = vsel %vm42, %v40, 0.0
    %v86 = vrot.slane %v85, 4
    %v87 = vadd.f32 %v85, %v86
    %v88 = vrot.slane %v87, 2
    %v89 = vadd.f32 %v87, %v88
    %v90 = vrot.slane %v89, 1
    %v91 = vadd.f32 %v89, %v90
    %v92 = vsel %vm42, %v41, 0.0
    %v93 = vrot.slane %v92, 4
    %v94 = vadd.f32 %v92, %v93
    %v95 = vrot.slane %v94, 2
    %v96 = vadd.f32 %v94, %v95
    %v97 = vrot.slane %v96, 1
    %v98 = vadd.f32 %v96, %v97
    %v99 = vmul.f32 %v34, %v34
    %v100 = vmul.f32 %v35, %v35
    %v101 = vmul.f32 %v36, %v36
    %v102 = vmul.f32 %v37, %v37
    %v103 = vmul.f32 %v38, %v38
    %v104 = vmul.f32 %v39, %v39
    %v105 = vmul.f32 %v40, %v40
    %v106 = vmul.f32 %v41, %v41
    %v107 = vsel %vm42, %v99, 0.0
    %v108 = vrot.slane %v107, 4
    %v109 = vadd.f32 %v107, %v108
    %v110 = vrot.slane %v109, 2
    %v111 = vadd.f32 %v109, %v110
    %v112 = vrot.slane %v111, 1
    %v113 = vadd.f32 %v111, %v112
    %v114 = vsel %vm42, %v100, 0.0
    %v115 = vrot.slane %v114, 4
    %v116 = vadd.f32 %v114, %v115
    %v117 = vrot.slane %v116, 2
    %v118 = vadd.f32 %v116, %v117
    %v119 = vrot.slane %v118, 1
    %v120 = vadd.f32 %v118, %v119
    %v121 = vsel %vm42, %v101, 0.0
    %v122 = vrot.slane %v121, 4
    %v123 = vadd.f32 %v121, %v122
    %v124 = vrot.slane %v123, 2
    %v125 = vadd.f32 %v123, %v124
    %v126 = vrot.slane %v125, 1
    %v127 = vadd.f32 %v125, %v126
    %v128 = vsel %vm42, %v102, 0.0
    %v129 = vrot.slane %v128, 4
    %v130 = vadd.f32 %v128, %v129
    %v131 = vrot.slane %v130, 2
    %v132 = vadd.f32 %v130, %v131
    %v133 = vrot.slane %v132, 1
    %v134 = vadd.f32 %v132, %v133
    %v135 = vsel %vm42, %v103, 0.0
    %v136 = vrot.slane %v135, 4
    %v137 = vadd.f32 %v135, %v136
    %v138 = vrot.slane %v137, 2
    %v139 = vadd.f32 %v137, %v138
    %v140 = vrot.slane %v139, 1
    %v141 = vadd.f32 %v139, %v140
    %v142 = vsel %vm42, %v104, 0.0
    %v143 = vrot.slane %v142, 4
    %v144 = vadd.f32 %v142, %v143
    %v145 = vrot.slane %v144, 2
    %v146 = vadd.f32 %v144, %v145
    %v147 = vrot.slane %v146, 1
    %v148 = vadd.f32 %v146, %v147
    %v149 = vsel %vm42, %v105, 0.0
    %v150 = vrot.slane %v149, 4
    %v151 = vadd.f32 %v149, %v150
    %v152 = vrot.slane %v151, 2
    %v153 = vadd.f32 %v151, %v152
    %v154 = vrot.slane %v153, 1
    %v155 = vadd.f32 %v153, %v154
    %v156 = vsel %vm42, %v106, 0.0
    %v157 = vrot.slane %v156, 4
    %v158 = vadd.f32 %v156, %v157
    %v159 = vrot.slane %v158, 2
    %v160 = vadd.f32 %v158, %v159
    %v161 = vrot.slane %v160, 1
    %v162 = vadd.f32 %v160, %v161
    %163 = vadd.xlane.f32.xlu0 %v49
    %v164 = vpop.xlane.xlu0 %163
    %165 = vadd.xlane.f32.xlu0 %v56
    %v166 = vpop.xlane.xlu0 %165
    %167 = vadd.xlane.f32.xlu0 %v63
    %v168 = vpop.xlane.xlu0 %167
    %169 = vadd.xlane.f32.xlu0 %v70
    %v170 = vpop.xlane.xlu0 %169
    %171 = vadd.xlane.f32.xlu0 %v77
    %v172 = vpop.xlane.xlu0 %171
    %173 = vadd.xlane.f32.xlu0 %v84
    %v174 = vpop.xlane.xlu0 %173
    %175 = vadd.xlane.f32.xlu0 %v91
    %v176 = vpop.xlane.xlu0 %175
    %177 = vadd.xlane.f32.xlu0 %v98
    %v178 = vpop.xlane.xlu0 %177
    %179 = vadd.xlane.f32.xlu0 %v113
    %v180 = vpop.xlane.xlu0 %179
    %181 = vadd.xlane.f32.xlu0 %v120
    %v182 = vpop.xlane.xlu0 %181
    %183 = vadd.xlane.f32.xlu0 %v127
    %v184 = vpop.xlane.xlu0 %183
    %185 = vadd.xlane.f32.xlu0 %v134
    %v186 = vpop.xlane.xlu0 %185
    %187 = vadd.xlane.f32.xlu0 %v141
    %v188 = vpop.xlane.xlu0 %187
    %189 = vadd.xlane.f32.xlu0 %v148
    %v190 = vpop.xlane.xlu0 %189
    %191 = vadd.xlane.f32.xlu0 %v155
    %v192 = vpop.xlane.xlu0 %191
    %193 = vadd.xlane.f32.xlu0 %v162
    %v194 = vpop.xlane.xlu0 %193
    %v195 = vld [vmem:[%s1] sm:$0x1]
    %v196 = vld [vmem:[%s1 + $0x1] sm:$0x1]
    %v197 = vld [vmem:[%s1 + $0x2] sm:$0x1]
    %v198 = vld [vmem:[%s1 + $0x3] sm:$0x1]
    %v199 = vld [vmem:[%s2] sm:$0x1]
    %v200 = vld [vmem:[%s2 + $0x1] sm:$0x1]
    %v201 = vld [vmem:[%s2 + $0x2] sm:$0x1]
    %v202 = vld [vmem:[%s2 + $0x3] sm:$0x1]
    %v203 = vld [vmem:[%s3] sm:$0x1]
    %v204 = vld [vmem:[%s3 + $0x1] sm:$0x1]
    %v205 = vld [vmem:[%s3 + $0x2] sm:$0x1]
    %v206 = vld [vmem:[%s3 + $0x3] sm:$0x1]
    %v207 = vmul.f32 %v164, 0.00390625
    %v208 = vmul.f32 %v166, 0.00390625
    %v209 = vmul.f32 %v168, 0.00390625
    %v210 = vmul.f32 %v170, 0.00390625
    %v211 = vmul.f32 %v172, 0.00390625
    %v212 = vmul.f32 %v174, 0.00390625
    %v213 = vmul.f32 %v176, 0.00390625
    %v214 = vmul.f32 %v178, 0.00390625
    %v215 = vmul.f32 %v180, 0.00390625
    %v216 = vmul.f32 %v182, 0.00390625
    %v217 = vmul.f32 %v184, 0.00390625
    %v218 = vmul.f32 %v186, 0.00390625
    %v219 = vmul.f32 %v188, 0.00390625
    %v220 = vmul.f32 %v190, 0.00390625
    %v221 = vmul.f32 %v192, 0.00390625
    %v222 = vmul.f32 %v194, 0.00390625
    %v223 = vmul.f32 %v207, %v207
    %v224 = vmul.f32 %v208, %v208
    %v225 = vmul.f32 %v209, %v209
    %v226 = vmul.f32 %v210, %v210
    %v227 = vmul.f32 %v211, %v211
    %v228 = vmul.f32 %v212, %v212
    %v229 = vmul.f32 %v213, %v213
    %v230 = vmul.f32 %v214, %v214
    %v231 = vsub.f32 %v215, %v223
    %v232 = vsub.f32 %v216, %v224
    %v233 = vsub.f32 %v217, %v225
    %v234 = vsub.f32 %v218, %v226
    %v235 = vsub.f32 %v219, %v227
    %v236 = vsub.f32 %v220, %v228
    %v237 = vsub.f32 %v221, %v229
    %v238 = vsub.f32 %v222, %v230
    %v239 = vmax.f32 %v231, 0.0
    %v240 = vmax.f32 %v232, 0.0
    %v241 = vmax.f32 %v233, 0.0
    %v242 = vmax.f32 %v234, 0.0
    %v243 = vmax.f32 %v235, 0.0
    %v244 = vmax.f32 %v236, 0.0
    %v245 = vmax.f32 %v237, 0.0
    %v246 = vmax.f32 %v238, 0.0
    %v247 = vadd.f32 %v207, %v208
    %v248 = vadd.f32 %v247, %v209
    %v249 = vadd.f32 %v248, %v210
    %v250 = vadd.f32 %v211, %v212
    %v251 = vadd.f32 %v250, %v213
    %v252 = vadd.f32 %v251, %v214
    %v253 = vrcp.pop 4.0
    %v254 = vmul.f32 4.0, %v253
    %v255 = vsub.f32 1.0, %v254
    %v256 = vmul.f32 %v253, %v255
    %v257 = vadd.f32 %v253, %v256
    %vm258 = vweird.f32 %v253
    %v259 = vsel %vm258, %v253, %v257
    %v260 = vmul.f32 %v249, %v259
    %v261 = vmul.f32 %v252, %v259
    %v262 = vsub.f32 %v207, %v260
    %v263 = vsub.f32 %v208, %v260
    %v264 = vsub.f32 %v209, %v260
    %v265 = vsub.f32 %v210, %v260
    %v266 = vsub.f32 %v211, %v261
    %v267 = vsub.f32 %v212, %v261
    %v268 = vsub.f32 %v213, %v261
    %v269 = vsub.f32 %v214, %v261
    %v270 = vmul.f32 %v262, %v262
    %v271 = vmul.f32 %v263, %v263
    %v272 = vmul.f32 %v264, %v264
    %v273 = vmul.f32 %v265, %v265
    %v274 = vmul.f32 %v266, %v266
    %v275 = vmul.f32 %v267, %v267
    %v276 = vmul.f32 %v268, %v268
    %v277 = vmul.f32 %v269, %v269
    %v278 = vadd.f32 %v270, %v271
    %v279 = vadd.f32 %v278, %v272
    %v280 = vadd.f32 %v279, %v273
    %v281 = vadd.f32 %v274, %v275
    %v282 = vadd.f32 %v281, %v276
    %v283 = vadd.f32 %v282, %v277
    %v284 = vmul.f32 %v280, 0.33333334
    %v285 = vmul.f32 %v283, 0.33333334
    %v286 = vadd.f32 %v284, 1e-05
    %v287 = vadd.f32 %v285, 1e-05
    %v288 = vrsqrt.pop %v286
    %v289 = vmul.f32 %v288, %v286
    %v290 = vmul.f32 %v289, %v288
    %v291 = vmul.f32 0.5, %v290
    %v292 = vsub.f32 1.5, %v291
    %v293 = vmul.f32 %v288, %v292
    %vm294 = vweird.f32 %v286
    %vm295 = vweird.f32 %v288
    %vm296 = vmor %vm294, %vm295
    %v297 = vsel %vm296, %v288, %v293
    %v298 = vrsqrt.pop %v287
    %v299 = vmul.f32 %v298, %v287
    %v300 = vmul.f32 %v299, %v298
    %v301 = vmul.f32 0.5, %v300
    %v302 = vsub.f32 1.5, %v301
    %v303 = vmul.f32 %v298, %v302
    %vm304 = vweird.f32 %v287
    %vm305 = vweird.f32 %v298
    %vm306 = vmor %vm304, %vm305
    %v307 = vsel %vm306, %v298, %v303
    %v308 = vmul.f32 %v262, %v297
    %v309 = vmul.f32 %v263, %v297
    %v310 = vmul.f32 %v264, %v297
    %v311 = vmul.f32 %v265, %v297
    %v312 = vmul.f32 %v266, %v307
    %v313 = vmul.f32 %v267, %v307
    %v314 = vmul.f32 %v268, %v307
    %v315 = vmul.f32 %v269, %v307
    %v316 = vadd.f32 %v239, 1e-05
    %v317 = vadd.f32 %v240, 1e-05
    %v318 = vadd.f32 %v241, 1e-05
    %v319 = vadd.f32 %v242, 1e-05
    %v320 = vadd.f32 %v243, 1e-05
    %v321 = vadd.f32 %v244, 1e-05
    %v322 = vadd.f32 %v245, 1e-05
    %v323 = vadd.f32 %v246, 1e-05
    %v324 = vrsqrt.pop %v316
    %v325 = vmul.f32 %v324, %v316
    %v326 = vmul.f32 %v325, %v324
    %v327 = vmul.f32 0.5, %v326
    %v328 = vsub.f32 1.5, %v327
    %v329 = vmul.f32 %v324, %v328
    %vm330 = vweird.f32 %v316
    %vm331 = vweird.f32 %v324
    %vm332 = vmor %vm330, %vm331
    %v333 = vsel %vm332, %v324, %v329
    %v334 = vrsqrt.pop %v317
    %v335 = vmul.f32 %v334, %v317
    %v336 = vmul.f32 %v335, %v334
    %v337 = vmul.f32 0.5, %v336
    %v338 = vsub.f32 1.5, %v337
    %v339 = vmul.f32 %v334, %v338
    %vm340 = vweird.f32 %v317
    %vm341 = vweird.f32 %v334
    %vm342 = vmor %vm340, %vm341
    %v343 = vsel %vm342, %v334, %v339
    %v344 = vrsqrt.pop %v318
    %v345 = vmul.f32 %v344, %v318
    %v346 = vmul.f32 %v345, %v344
    %v347 = vmul.f32 0.5, %v346
    %v348 = vsub.f32 1.5, %v347
    %v349 = vmul.f32 %v344, %v348
    %vm350 = vweird.f32 %v318
    %vm351 = vweird.f32 %v344
    %vm352 = vmor %vm350, %vm351
    %v353 = vsel %vm352, %v344, %v349
    %v354 = vrsqrt.pop %v319
    %v355 = vmul.f32 %v354, %v319
    %v356 = vmul.f32 %v355, %v354
    %v357 = vmul.f32 0.5, %v356
    %v358 = vsub.f32 1.5, %v357
    %v359 = vmul.f32 %v354, %v358
    %vm360 = vweird.f32 %v319
    %vm361 = vweird.f32 %v354
    %vm362 = vmor %vm360, %vm361
    %v363 = vsel %vm362, %v354, %v359
    %v364 = vrsqrt.pop %v320
    %v365 = vmul.f32 %v364, %v320
    %v366 = vmul.f32 %v365, %v364
    %v367 = vmul.f32 0.5, %v366
    %v368 = vsub.f32 1.5, %v367
    %v369 = vmul.f32 %v364, %v368
    %vm370 = vweird.f32 %v320
    %vm371 = vweird.f32 %v364
    %vm372 = vmor %vm370, %vm371
    %v373 = vsel %vm372, %v364, %v369
    %v374 = vrsqrt.pop %v321
    %v375 = vmul.f32 %v374, %v321
    %v376 = vmul.f32 %v375, %v374
    %v377 = vmul.f32 0.5, %v376
    %v378 = vsub.f32 1.5, %v377
    %v379 = vmul.f32 %v374, %v378
    %vm380 = vweird.f32 %v321
    %vm381 = vweird.f32 %v374
    %vm382 = vmor %vm380, %vm381
    %v383 = vsel %vm382, %v374, %v379
    %v384 = vrsqrt.pop %v322
    %v385 = vmul.f32 %v384, %v322
    %v386 = vmul.f32 %v385, %v384
    %v387 = vmul.f32 0.5, %v386
    %v388 = vsub.f32 1.5, %v387
    %v389 = vmul.f32 %v384, %v388
    %vm390 = vweird.f32 %v322
    %vm391 = vweird.f32 %v384
    %vm392 = vmor %vm390, %vm391
    %v393 = vsel %vm392, %v384, %v389
    %v394 = vrsqrt.pop %v323
    %v395 = vmul.f32 %v394, %v323
    %v396 = vmul.f32 %v395, %v394
    %v397 = vmul.f32 0.5, %v396
    %v398 = vsub.f32 1.5, %v397
    %v399 = vmul.f32 %v394, %v398
    %vm400 = vweird.f32 %v323
    %vm401 = vweird.f32 %v394
    %vm402 = vmor %vm400, %vm401
    %v403 = vsel %vm402, %v394, %v399
    %v404 = vmul.f32 %v195, %v333
    %v405 = vmul.f32 %v196, %v343
    %v406 = vmul.f32 %v197, %v353
    %v407 = vmul.f32 %v198, %v363
    %v408 = vmul.f32 %v195, %v373
    %v409 = vmul.f32 %v196, %v383
    %v410 = vmul.f32 %v197, %v393
    %v411 = vmul.f32 %v198, %v403
    %v412 = vmul.f32 %v199, %v308
    %v413 = vmul.f32 %v200, %v309
    %v414 = vmul.f32 %v201, %v310
    %v415 = vmul.f32 %v202, %v311
    %v416 = vmul.f32 %v199, %v312
    %v417 = vmul.f32 %v200, %v313
    %v418 = vmul.f32 %v201, %v314
    %v419 = vmul.f32 %v202, %v315
    %v420 = vadd.f32 %v203, %v412
    %v421 = vadd.f32 %v204, %v413
    %v422 = vadd.f32 %v205, %v414
    %v423 = vadd.f32 %v206, %v415
    %v424 = vadd.f32 %v203, %v416
    %v425 = vadd.f32 %v204, %v417
    %v426 = vadd.f32 %v205, %v418
    %v427 = vadd.f32 %v206, %v419
    %v428 = vmul.f32 %v207, %v404
    %v429 = vmul.f32 %v208, %v405
    %v430 = vmul.f32 %v209, %v406
    %v431 = vmul.f32 %v210, %v407
    %v432 = vmul.f32 %v211, %v408
    %v433 = vmul.f32 %v212, %v409
    %v434 = vmul.f32 %v213, %v410
    %v435 = vmul.f32 %v214, %v411
    %v436 = vsub.f32 %v420, %v428
    %v437 = vsub.f32 %v421, %v429
    %v438 = vsub.f32 %v422, %v430
    %v439 = vsub.f32 %v423, %v431
    %v440 = vsub.f32 %v424, %v432
    %v441 = vsub.f32 %v425, %v433
    %v442 = vsub.f32 %v426, %v434
    %v443 = vsub.f32 %v427, %v435
    %v452 = vperm.slane %v404, 0
    %v453 = vperm.slane %v405, 0
    %v454 = vperm.slane %v406, 0
    %v455 = vperm.slane %v407, 0
    %v456 = vperm.slane %v408, 0
    %v457 = vperm.slane %v409, 0
    %v458 = vperm.slane %v410, 0
    %v459 = vperm.slane %v411, 0
    %460 = vset.pattern.permute.xlu0 0
    %461 = vperm.xlu0 %460, %v452
    %v462 = vpop.permute.xlu0 %461
    %464 = vset.pattern.permute.xlu0 0
    %465 = vperm.xlu0 %464, %v453
    %v466 = vpop.permute.xlu0 %465
    %468 = vset.pattern.permute.xlu0 0
    %469 = vperm.xlu0 %468, %v454
    %v470 = vpop.permute.xlu0 %469
    %472 = vset.pattern.permute.xlu0 0
    %473 = vperm.xlu0 %472, %v455
    %v474 = vpop.permute.xlu0 %473
    %476 = vset.pattern.permute.xlu0 0
    %477 = vperm.xlu0 %476, %v456
    %v478 = vpop.permute.xlu0 %477
    %480 = vset.pattern.permute.xlu0 0
    %481 = vperm.xlu0 %480, %v457
    %v482 = vpop.permute.xlu0 %481
    %484 = vset.pattern.permute.xlu0 0
    %485 = vperm.xlu0 %484, %v458
    %v486 = vpop.permute.xlu0 %485
    %488 = vset.pattern.permute.xlu0 0
    %489 = vperm.xlu0 %488, %v459
    %v490 = vpop.permute.xlu0 %489
    %v492 = vmul.f32 %v34, %v462
    %v493 = vmul.f32 %v35, %v466
    %v494 = vmul.f32 %v36, %v470
    %v495 = vmul.f32 %v37, %v474
    %v496 = vmul.f32 %v38, %v478
    %v497 = vmul.f32 %v39, %v482
    %v498 = vmul.f32 %v40, %v486
    %v499 = vmul.f32 %v41, %v490
    %v508 = vperm.slane %v436, 0
    %v509 = vperm.slane %v437, 0
    %v510 = vperm.slane %v438, 0
    %v511 = vperm.slane %v439, 0
    %v512 = vperm.slane %v440, 0
    %v513 = vperm.slane %v441, 0
    %v514 = vperm.slane %v442, 0
    %v515 = vperm.slane %v443, 0
    %516 = vset.pattern.permute.xlu0 0
    %517 = vperm.xlu0 %516, %v508
    %v518 = vpop.permute.xlu0 %517
    %520 = vset.pattern.permute.xlu0 0
    %521 = vperm.xlu0 %520, %v509
    %v522 = vpop.permute.xlu0 %521
    %524 = vset.pattern.permute.xlu0 0
    %525 = vperm.xlu0 %524, %v510
    %v526 = vpop.permute.xlu0 %525
    %528 = vset.pattern.permute.xlu0 0
    %529 = vperm.xlu0 %528, %v511
    %v530 = vpop.permute.xlu0 %529
    %532 = vset.pattern.permute.xlu0 0
    %533 = vperm.xlu0 %532, %v512
    %v534 = vpop.permute.xlu0 %533
    %536 = vset.pattern.permute.xlu0 0
    %537 = vperm.xlu0 %536, %v513
    %v538 = vpop.permute.xlu0 %537
    %540 = vset.pattern.permute.xlu0 0
    %541 = vperm.xlu0 %540, %v514
    %v542 = vpop.permute.xlu0 %541
    %544 = vset.pattern.permute.xlu0 0
    %545 = vperm.xlu0 %544, %v515
    %v546 = vpop.permute.xlu0 %545
    %v548 = vadd.f32 %v492, %v518
    %v549 = vadd.f32 %v493, %v522
    %v550 = vadd.f32 %v494, %v526
    %v551 = vadd.f32 %v495, %v530
    %v552 = vadd.f32 %v496, %v534
    %v553 = vadd.f32 %v497, %v538
    %v554 = vadd.f32 %v498, %v542
    %v555 = vadd.f32 %v499, %v546
    %556 = vst [vmem:[#allocation5] sm:$0x3] %v548
    %557 = vst [vmem:[#allocation5 + $0x2] sm:$0x3] %v549
    %558 = vst [vmem:[#allocation5 + $0x4] sm:$0x3] %v550
    %559 = vst [vmem:[#allocation5 + $0x6] sm:$0x3] %v551
    %560 = vst [vmem:[#allocation5 + $0x8] sm:$0x3] %v552
    %561 = vst [vmem:[#allocation5 + $0xa] sm:$0x3] %v553
    %562 = vst [vmem:[#allocation5 + $0xc] sm:$0x3] %v554
    %563 = vst [vmem:[#allocation5 + $0xe] sm:$0x3] %v555
    // Predicated region
    $region22: #{tpu_custom_call.1} parent=1 // pred_check
      _
    $region23: #{tpu_custom_call.1} parent=1 // pred_check_branch
      %565 = sbr.rel (0) target = $region25
    $region24: #{tpu_custom_call.1} parent=1 // pred_region
      %567 = vsyncadd [#allocation4], 0
      %s568 = sshll.u32 [#allocation5], 4
      %s569 = int_to_ptr.vmem [resolvable:$true] %s568
      %s570 = sshll.u32 %s4, 4
      %s571 = int_to_ptr.hbm [resolvable:$true] %s570
      %576 = dma.vmem_to_hbm [thread:$0]  %s569, 256, %s571, [#allocation4], 32, 32, 2
    $region25: #{tpu_custom_call.1} parent=1 // pred_fallthru
      _
    // Predicated region
    $region26: #{tpu_custom_call.1} parent=1 // pred_check
      _
    $region27: #{tpu_custom_call.1} parent=1 // pred_check_branch
      %578 = sbr.rel (0) target = $region29
    $region28: #{tpu_custom_call.1} parent=1 // pred_region
      %580 = dma.done [#allocation4], 256
    $region29: #{tpu_custom_call.1} parent=1 // pred_fallthru
      _
    %581 = vsyncpa [#allocation3], 1
    %582 = vsyncpa [#allocation4], 1

</llo_original>
